<compile_context>
chip_gen: v7x
topology: tpu7x:2x2x1
jax: 0.10.0
libtpu: 0.0.40
codegen_flags: <defaults>
</compile_context>

<pallas_src>
import math

import jax
import jax.numpy as jnp
from jax import lax
from jax.experimental import pallas as pl
from jax.experimental.pallas import tpu as pltpu

# ---- small, module-consistent sizes -----------------------------------------
BATCH = 2          # batch_size
NUM_CANDS = 4      # candidates per example (second dim of input_ids)
SEQ = 16           # seq_len
HIDDEN = 32        # config.hidden_size
VOCAB = 64

NEG_MIN = float(jnp.finfo(jnp.float32).min)


def ssmatcher_kernel(ctx_ref, masks_ref, wqt_ref, out_ref):
    # ctx arrives in the caller's dtype (f32 here; bf16 callers halve the DMA);
    # all elementwise / softmax / cosine math runs in f32 (v5e has no bf16 VPU).
    ctx = ctx_ref[...].astype(jnp.float32)     # (N, S, H)
    masks = masks_ref[...]                     # (2N, S): rows [:N] pronoun, [N:] candidates
    wqt = wqt_ref[...]                         # (H, H) = W_query.T (pre-transposed host-side)

    n, s, h = ctx.shape
    scale = 1.0 / math.sqrt(h)

    # --- queries ---------------------------------------------------------------
    # Fold the 1/sqrt(H) score scale into ctx0 once (linear in the query).
    ctx0 = ctx[:, 0, :] * scale                                          # (N, H)
    q_pron = ctx0                                                        # pronoun query
    q_cap = jnp.dot(ctx0, wqt, preferred_element_type=jnp.float32)       # cap query (MXU)

    # --- q=1 attention scores: VPU broadcast-mul + lane reduce (no tiny matmuls)
    att_p = jnp.sum(q_pron[:, None, :] * ctx, axis=-1)                   # (N, S)
    att_c = jnp.sum(q_cap[:, None, :] * ctx, axis=-1)                    # (N, S)

    def masked_softmax(att, mask):
        # XSoftmax semantics: mask>0 keeps; masked positions get dtype-min before
        # the softmax and are re-zeroed afterwards.
        keep = mask > 0.0
        filled = jnp.where(keep, att, NEG_MIN)
        m = jnp.max(filled, axis=-1, keepdims=True)
        e = jnp.exp(filled - m)
        denom = jnp.sum(e, axis=-1, keepdims=True)
        # approx reciprocal runs on the otherwise-idle EUP; the per-row scale
        # error is a uniform scale on the pooled encoding and cancels exactly in
        # the cosine below.
        return jnp.where(keep, e * pl.reciprocal(denom, approx=True), 0.0)

    p_p = masked_softmax(att_p, masks[:n])                               # (N, S)
    p_c = masked_softmax(att_c, masks[n:])                               # (N, S)

    # --- pooled encodings: broadcast-mul + sublane reduce over S ---------------
    pron = jnp.sum(p_p[:, :, None] * ctx, axis=1)                        # (N, H)
    cand = jnp.sum(p_c[:, :, None] * ctx, axis=1)                        # (N, H)

    # --- cosine similarity (one EUP rsqrt replaces two sqrt + a divide) --------
    dot = jnp.sum(cand * pron, axis=-1, keepdims=True)                   # (N, 1)
    ss = (jnp.sum(cand * cand, axis=-1, keepdims=True) *
          jnp.sum(pron * pron, axis=-1, keepdims=True))                  # (N, 1)
    sim = dot * lax.rsqrt(ss + 1e-18)          # eps = (1e-9)^2, ~reference's +1e-9 on the norm product

    # rows with no candidates get -10000, then cosine logits map to [0, 1]
    has_cand = jnp.sum(masks[n:], axis=-1, keepdims=True) > 0.0          # (N, 1)
    logits = jnp.where(has_cand, sim, sim - 10000.0)
    logits01 = (logits + 1.0) * 0.5                                      # (N, 1)

    # --- lane-dense (1, N) store ------------------------------------------------
    # One-hot broadcast + sublane reduce turns the (N,1) column into a (1,N) row
    # without relying on sub-tile reshape/transpose lowering; single row store.
    eye = (lax.broadcasted_iota(jnp.int32, (n, n), 0) ==
           lax.broadcasted_iota(jnp.int32, (n, n), 1)).astype(jnp.float32)
    out_ref[...] = jnp.sum(logits01 * eye, axis=0, keepdims=True)        # (1, N)


def ssmatcher_pallas(ctx_layer, pronoun_mask, candidate_masks, wq):
    N, S, H = ctx_layer.shape
    # Layout plumbing done once by XLA outside the kernel: stack only the (tiny)
    # masks for the two pooling passes and pre-transpose the `cap` query weight.
    # ctx_layer is passed untouched (no dtype cast, no duplication).
    masks2 = jnp.concatenate([pronoun_mask, candidate_masks],
                             axis=0).astype(jnp.float32)                 # (2N, S)
    wqt = wq.astype(jnp.float32).T                                       # (H, H) = W_query.T

    # Whole problem is VMEM-resident: no grid, whole-array blocks in VMEM.
    # (Real-BERT sizes on v7x: re-tile with a "parallel" row grid + explicit
    #  vmem_limit_bytes instead of this single fat step.)
    out = pl.pallas_call(
        ssmatcher_kernel,
        out_shape=jax.ShapeDtypeStruct((1, N), jnp.float32),
        in_specs=[
            pl.BlockSpec(memory_space=pltpu.MemorySpace.VMEM),
            pl.BlockSpec(memory_space=pltpu.MemorySpace.VMEM),
            pl.BlockSpec(memory_space=pltpu.MemorySpace.VMEM),
        ],
        out_specs=pl.BlockSpec(memory_space=pltpu.MemorySpace.VMEM),
    )(ctx_layer, masks2, wqt)
    return out[0]                                                        # (N,)


def ssmatcher_forward(ctx_layer, pronoun_mask, candidate_masks, wq, batch_size):
    """SSMatcher.forward (eval mode), given the BERT context layer."""
    sim = ssmatcher_pallas(ctx_layer, pronoun_mask, candidate_masks, wq)
    logits = sim.reshape(batch_size, -1)
    loss = jnp.zeros((1,), jnp.float32)          # eval mode: loss stays zero
    return logits, loss


# ---- plain-JAX reference (mirrors the PyTorch math) --------------------------
def reference_forward(ctx_layer, pronoun_mask, candidate_masks, wq, batch_size):
    N, S, H = ctx_layer.shape
    scale = 1.0 / math.sqrt(H)
    ctx_layer = ctx_layer.astype(jnp.float32)
    ctx0 = ctx_layer[:, 0:1, :]

    def xsoftmax(att, mask):
        keep = mask > 0
        filled = jnp.where(keep, att, NEG_MIN)
        p = jax.nn.softmax(filled, axis=-1)
        return jnp.where(keep, p, 0.0)

    att_p = jnp.einsum('nqh,nsh->nqs', ctx0, ctx_layer) * scale
    att_p = xsoftmax(att_p, pronoun_mask[:, None, :])
    pron = jnp.einsum('nqs,nsh->nqh', att_p, ctx_layer)

    q = ctx0 @ wq.T
    att_c = jnp.einsum('nqh,nsh->nqs', q, ctx_layer) * scale
    att_c = xsoftmax(att_c, candidate_masks[:, None, :])
    cand = jnp.einsum('nqs,nsh->nqh', att_c, ctx_layer)

    dot = jnp.sum(cand * pron, axis=-1)                     # (N, 1)
    nrm = jnp.linalg.norm(cand, axis=-1) * jnp.linalg.norm(pron, axis=-1)
    sim = (dot / (nrm + 1e-9)).reshape(batch_size, -1)
    cands_id = (candidate_masks.sum(-1) > 0).astype(jnp.float32).reshape(batch_size, -1)
    logits = sim + (-10000.0) * (1.0 - cands_id)
    return (logits + 1.0) / 2.0


if __name__ == "__main__":
    key = jax.random.PRNGKey(0)
    k_tok, k_cmask, k_pron, k_wq, k_emb, k_type = jax.random.split(key, 6)

    # input_ids layout matches the PyTorch module: (B, num_cands, 5, S) with the
    # 5-slice = [token_ids, mask_ids, type_ids, candidate_masks, pronoun_mask].
    token_ids = jax.random.randint(k_tok, (BATCH, NUM_CANDS, SEQ), 0, VOCAB)
    mask_ids = jnp.ones((BATCH, NUM_CANDS, SEQ), jnp.int32)
    type_ids = jnp.zeros((BATCH, NUM_CANDS, SEQ), jnp.int32)
    candidate_masks = jax.random.bernoulli(k_cmask, 0.3, (BATCH, NUM_CANDS, SEQ)).astype(jnp.int32)
    candidate_masks = candidate_masks.at[0, 3].set(0)        # one empty-candidate row
    pron_pos = jax.random.randint(k_pron, (BATCH, NUM_CANDS), 1, SEQ)
    pronoun_mask = jax.nn.one_hot(pron_pos, SEQ, dtype=jnp.int32)
    input_ids = jnp.stack([token_ids, mask_ids, type_ids, candidate_masks, pronoun_mask], axis=2)

    # SSMatcher.forward glue: flatten (B, C, 5, S) -> (N, 5, S) and split.
    N = BATCH * NUM_CANDS
    flat = input_ids.reshape(N, 5, SEQ)
    token_ids_f, mask_ids_f, type_ids_f, cand_masks_f, pron_mask_f = [flat[:, i, :] for i in range(5)]

    # TODO(synk): the full BERT encoder is an external module passed into forward();
    # it is stubbed here with a deterministic embedding-based encoder in plain JAX.
    tok_emb = jax.random.normal(k_emb, (VOCAB, HIDDEN), jnp.float32) * 0.5
    type_emb = jax.random.normal(k_type, (2, HIDDEN), jnp.float32) * 0.1
    ctx_layer = (tok_emb[token_ids_f] + type_emb[type_ids_f]) * mask_ids_f[..., None].astype(jnp.float32)

    # Deterministic `cap` pooling query weight (torch.nn.Linear(H, H, bias=False)).
    wq = jax.random.normal(k_wq, (HIDDEN, HIDDEN), jnp.float32) * (1.0 / math.sqrt(HIDDEN))

    logits, loss = ssmatcher_forward(ctx_layer, pron_mask_f, cand_masks_f, wq, BATCH)
    logits = jax.block_until_ready(logits)

    ref = reference_forward(ctx_layer, pron_mask_f.astype(jnp.float32),
                            cand_masks_f.astype(jnp.float32), wq, BATCH)
    assert logits.shape == (BATCH, NUM_CANDS)
    assert loss.shape == (1,)
    assert jnp.allclose(logits, ref, atol=1e-4, rtol=1e-5), (logits, ref)
    print("KERNEL_OK")
</pallas_src>

<mosaic_0001>
module attributes {stable_mosaic.version = 11 : i64} {
  func.func @ssmatcher_kernel(%arg0: memref<8x16x32xf32, #tpu.memory_space<vmem>>, %arg1: memref<16x16xf32, #tpu.memory_space<vmem>>, %arg2: memref<32x32xf32, #tpu.memory_space<vmem>>, %arg3: memref<1x8xf32, #tpu.memory_space<vmem>>) attributes {dimension_semantics = [], scalar_prefetch = 0 : i64, scratch_operands = 0 : i64, tpu.core_type = #tpu.core_type<tc>} {
    %c0 = arith.constant 0 : index
    %c0_0 = arith.constant 0 : index
    %c0_1 = arith.constant 0 : index
    %0 = vector.load %arg0[%c0, %c0_0, %c0_1] : memref<8x16x32xf32, #tpu.memory_space<vmem>>, vector<8x16x32xf32>
    %c0_2 = arith.constant 0 : index
    %c0_3 = arith.constant 0 : index
    %1 = vector.load %arg1[%c0_2, %c0_3] : memref<16x16xf32, #tpu.memory_space<vmem>>, vector<16x16xf32>
    %c0_4 = arith.constant 0 : index
    %c0_5 = arith.constant 0 : index
    %2 = vector.load %arg2[%c0_4, %c0_5] : memref<32x32xf32, #tpu.memory_space<vmem>>, vector<32x32xf32>
    %3 = vector.extract_strided_slice %0 {offsets = [0, 0, 0], sizes = [8, 1, 32], strides = [1, 1, 1]} : vector<8x16x32xf32> to vector<8x1x32xf32>
    %4 = vector.shape_cast %3 : vector<8x1x32xf32> to vector<8x32xf32>
    %cst = arith.constant 0.176776692 : f32
    %5 = vector.broadcast %cst : f32 to vector<8x32xf32>
    %6 = arith.mulf %4, %5 : vector<8x32xf32>
    %cst_6 = arith.constant dense<0.000000e+00> : vector<8x32xf32>
    %7 = tpu.matmul %6, %2, %cst_6 {dimension_numbers = #tpu.dot_dimension_numbers<[1], [0], [0], [1], [0, 0, 1, 1], [], []>} : vector<8x32xf32>, vector<32x32xf32>, vector<8x32xf32> -> vector<8x32xf32>
    %8 = vector.shape_cast %6 : vector<8x32xf32> to vector<8x1x32xf32>
    %9 = vector.broadcast %8 : vector<8x1x32xf32> to vector<8x16x32xf32>
    %10 = arith.mulf %9, %0 : vector<8x16x32xf32>
    %cst_7 = arith.constant dense<0.000000e+00> : vector<8x16xf32>
    %11 = vector.multi_reduction <add>, %10, %cst_7 [2] : vector<8x16x32xf32> to vector<8x16xf32>
    %12 = vector.shape_cast %7 : vector<8x32xf32> to vector<8x1x32xf32>
    %13 = vector.broadcast %12 : vector<8x1x32xf32> to vector<8x16x32xf32>
    %14 = arith.mulf %13, %0 : vector<8x16x32xf32>
    %cst_8 = arith.constant dense<0.000000e+00> : vector<8x16xf32>
    %15 = vector.multi_reduction <add>, %14, %cst_8 [2] : vector<8x16x32xf32> to vector<8x16xf32>
    %16 = vector.extract_strided_slice %1 {offsets = [0, 0], sizes = [8, 16], strides = [1, 1]} : vector<16x16xf32> to vector<8x16xf32>
    %cst_9 = arith.constant 0.000000e+00 : f32
    %17 = vector.broadcast %cst_9 : f32 to vector<8x16xf32>
    %18 = arith.cmpf ogt, %16, %17 : vector<8x16xf32>
    %cst_10 = arith.constant -3.40282347E+38 : f32
    %19 = vector.broadcast %cst_10 : f32 to vector<8x16xf32>
    %20 = arith.select %18, %11, %19 : vector<8x16xi1>, vector<8x16xf32>
    %cst_11 = arith.constant dense<0xFF800000> : vector<8xf32>
    %21 = vector.multi_reduction <maximumf>, %20, %cst_11 [1] : vector<8x16xf32> to vector<8xf32>
    %22 = vector.shape_cast %21 : vector<8xf32> to vector<8x1xf32>
    %23 = vector.broadcast %22 : vector<8x1xf32> to vector<8x16xf32>
    %24 = arith.subf %20, %23 : vector<8x16xf32>
    %25 = math.exp %24 : vector<8x16xf32>
    %cst_12 = arith.constant dense<0.000000e+00> : vector<8xf32>
    %26 = vector.multi_reduction <add>, %25, %cst_12 [1] : vector<8x16xf32> to vector<8xf32>
    %27 = vector.shape_cast %26 : vector<8xf32> to vector<8x1xf32>
    %28 = tpu.reciprocal %27 {approx = true} : vector<8x1xf32> -> vector<8x1xf32>
    %29 = vector.broadcast %28 : vector<8x1xf32> to vector<8x16xf32>
    %30 = arith.mulf %25, %29 : vector<8x16xf32>
    %cst_13 = arith.constant 0.000000e+00 : f32
    %31 = vector.broadcast %cst_13 : f32 to vector<8x16xf32>
    %32 = arith.select %18, %30, %31 : vector<8x16xi1>, vector<8x16xf32>
    %33 = vector.extract_strided_slice %1 {offsets = [8, 0], sizes = [8, 16], strides = [1, 1]} : vector<16x16xf32> to vector<8x16xf32>
    %cst_14 = arith.constant 0.000000e+00 : f32
    %34 = vector.broadcast %cst_14 : f32 to vector<8x16xf32>
    %35 = arith.cmpf ogt, %33, %34 : vector<8x16xf32>
    %cst_15 = arith.constant -3.40282347E+38 : f32
    %36 = vector.broadcast %cst_15 : f32 to vector<8x16xf32>
    %37 = arith.select %35, %15, %36 : vector<8x16xi1>, vector<8x16xf32>
    %cst_16 = arith.constant dense<0xFF800000> : vector<8xf32>
    %38 = vector.multi_reduction <maximumf>, %37, %cst_16 [1] : vector<8x16xf32> to vector<8xf32>
    %39 = vector.shape_cast %38 : vector<8xf32> to vector<8x1xf32>
    %40 = vector.broadcast %39 : vector<8x1xf32> to vector<8x16xf32>
    %41 = arith.subf %37, %40 : vector<8x16xf32>
    %42 = math.exp %41 : vector<8x16xf32>
    %cst_17 = arith.constant dense<0.000000e+00> : vector<8xf32>
    %43 = vector.multi_reduction <add>, %42, %cst_17 [1] : vector<8x16xf32> to vector<8xf32>
    %44 = vector.shape_cast %43 : vector<8xf32> to vector<8x1xf32>
    %45 = tpu.reciprocal %44 {approx = true} : vector<8x1xf32> -> vector<8x1xf32>
    %46 = vector.broadcast %45 : vector<8x1xf32> to vector<8x16xf32>
    %47 = arith.mulf %42, %46 : vector<8x16xf32>
    %cst_18 = arith.constant 0.000000e+00 : f32
    %48 = vector.broadcast %cst_18 : f32 to vector<8x16xf32>
    %49 = arith.select %35, %47, %48 : vector<8x16xi1>, vector<8x16xf32>
    %50 = vector.shape_cast %32 : vector<8x16xf32> to vector<8x16x1xf32>
    %51 = vector.broadcast %50 : vector<8x16x1xf32> to vector<8x16x32xf32>
    %52 = arith.mulf %51, %0 : vector<8x16x32xf32>
    %cst_19 = arith.constant dense<0.000000e+00> : vector<8x32xf32>
    %53 = vector.multi_reduction <add>, %52, %cst_19 [1] : vector<8x16x32xf32> to vector<8x32xf32>
    %54 = vector.shape_cast %49 : vector<8x16xf32> to vector<8x16x1xf32>
    %55 = vector.broadcast %54 : vector<8x16x1xf32> to vector<8x16x32xf32>
    %56 = arith.mulf %55, %0 : vector<8x16x32xf32>
    %cst_20 = arith.constant dense<0.000000e+00> : vector<8x32xf32>
    %57 = vector.multi_reduction <add>, %56, %cst_20 [1] : vector<8x16x32xf32> to vector<8x32xf32>
    %58 = arith.mulf %57, %53 : vector<8x32xf32>
    %cst_21 = arith.constant dense<0.000000e+00> : vector<8xf32>
    %59 = vector.multi_reduction <add>, %58, %cst_21 [1] : vector<8x32xf32> to vector<8xf32>
    %60 = vector.shape_cast %59 : vector<8xf32> to vector<8x1xf32>
    %61 = arith.mulf %57, %57 : vector<8x32xf32>
    %cst_22 = arith.constant dense<0.000000e+00> : vector<8xf32>
    %62 = vector.multi_reduction <add>, %61, %cst_22 [1] : vector<8x32xf32> to vector<8xf32>
    %63 = vector.shape_cast %62 : vector<8xf32> to vector<8x1xf32>
    %64 = arith.mulf %53, %53 : vector<8x32xf32>
    %cst_23 = arith.constant dense<0.000000e+00> : vector<8xf32>
    %65 = vector.multi_reduction <add>, %64, %cst_23 [1] : vector<8x32xf32> to vector<8xf32>
    %66 = vector.shape_cast %65 : vector<8xf32> to vector<8x1xf32>
    %67 = arith.mulf %63, %66 : vector<8x1xf32>
    %cst_24 = arith.constant 1.000000e-18 : f32
    %68 = vector.broadcast %cst_24 : f32 to vector<8x1xf32>
    %69 = arith.addf %67, %68 : vector<8x1xf32>
    %70 = math.rsqrt %69 : vector<8x1xf32>
    %71 = arith.mulf %60, %70 : vector<8x1xf32>
    %72 = vector.extract_strided_slice %1 {offsets = [8, 0], sizes = [8, 16], strides = [1, 1]} : vector<16x16xf32> to vector<8x16xf32>
    %cst_25 = arith.constant dense<0.000000e+00> : vector<8xf32>
    %73 = vector.multi_reduction <add>, %72, %cst_25 [1] : vector<8x16xf32> to vector<8xf32>
    %74 = vector.shape_cast %73 : vector<8xf32> to vector<8x1xf32>
    %cst_26 = arith.constant 0.000000e+00 : f32
    %75 = vector.broadcast %cst_26 : f32 to vector<8x1xf32>
    %76 = arith.cmpf ogt, %74, %75 : vector<8x1xf32>
    %cst_27 = arith.constant 1.000000e+04 : f32
    %77 = vector.broadcast %cst_27 : f32 to vector<8x1xf32>
    %78 = arith.subf %71, %77 : vector<8x1xf32>
    %79 = arith.select %76, %71, %78 : vector<8x1xi1>, vector<8x1xf32>
    %cst_28 = arith.constant 1.000000e+00 : f32
    %80 = vector.broadcast %cst_28 : f32 to vector<8x1xf32>
    %81 = arith.addf %79, %80 : vector<8x1xf32>
    %cst_29 = arith.constant 5.000000e-01 : f32
    %82 = vector.broadcast %cst_29 : f32 to vector<8x1xf32>
    %83 = arith.mulf %81, %82 : vector<8x1xf32>
    %84 = tpu.iota {dimensions = array<i32: 0>} : vector<8x8xi32>
    %85 = tpu.iota {dimensions = array<i32: 1>} : vector<8x8xi32>
    %86 = arith.cmpi eq, %84, %85 : vector<8x8xi32>
    %87 = arith.extui %86 : vector<8x8xi1> to vector<8x8xi32>
    %88 = arith.sitofp %87 : vector<8x8xi32> to vector<8x8xf32>
    %89 = vector.broadcast %83 : vector<8x1xf32> to vector<8x8xf32>
    %90 = arith.mulf %89, %88 : vector<8x8xf32>
    %cst_30 = arith.constant dense<0.000000e+00> : vector<8xf32>
    %91 = vector.multi_reduction <add>, %90, %cst_30 [0] : vector<8x8xf32> to vector<8xf32>
    %92 = vector.shape_cast %91 : vector<8xf32> to vector<1x8xf32>
    %c0_31 = arith.constant 0 : index
    %c0_32 = arith.constant 0 : index
    %93 = vector.load %arg3[%c0_31, %c0_32] : memref<1x8xf32, #tpu.memory_space<vmem>>, vector<1x8xf32>
    tpu.vector_store %arg3[%c0_31, %c0_32], %92 {strides = array<i32>} : memref<1x8xf32, #tpu.memory_space<vmem>>, vector<1x8xf32>,
    return
  }
}

</mosaic_0001>

<llo_original>
// kernel: tpu_custom_call.1
$region0: #{tpu_custom_call.1}
  #allocation0 [shape = 'u32[]', space=smem, size = 0x4, offset = 0x4, fixed_abs, tag = 'smem constant byte address 0x4 - core index']
  #allocation1 [shape = 'u32[144,128]{1,0:T(1,128)}', space=vmem, size = 0x12000, scoped, tag = 'internal scratch']
  %s0 = inlined_call_operand.hbm [shape: f32[8,16,32], index: 0, kind: input, shape index: {}]
  %s1 = inlined_call_operand.hbm [shape: f32[16,16], index: 1, kind: input, shape index: {}]
  %s2 = inlined_call_operand.hbm [shape: f32[32,32], index: 2, kind: input, shape index: {}]
  %s3 = inlined_call_operand.hbm [shape: f32[1,8], index: 3, kind: output, shape index: {}]
  %s4 = sld [smem:[#allocation0]]
  $region34: #{tpu_custom_call.1} parent=0
    _
  %s6 = ssub.s32 1, %s4
  %s7 = scalar_select 0, %s6, %s4
  $region1: #{tpu_custom_call.1} parent=0
    #allocation2 [shape = 'u8[65536]{0}', space=vmem, size = 0x10000, scoped, tag = 'input window, operand 0, single buffered']
    #allocation3 [shape = 's32[1]{0}', space=sflag, size = 0x4, scoped, tag = 'scoped memory for tpu_custom_call.1']
    #allocation4 [shape = 's32[1]{0}', space=sflag, size = 0x4, scoped, tag = 'scoped memory for tpu_custom_call.1']
    #allocation5 [shape = 'u8[8192]{0}', space=vmem, size = 0x2000, scoped, tag = 'input window, operand 1, single buffered']
    #allocation6 [shape = 's32[1]{0}', space=sflag, size = 0x4, scoped, tag = 'scoped memory for tpu_custom_call.1']
    #allocation7 [shape = 'u8[16384]{0}', space=vmem, size = 0x4000, scoped, tag = 'input window, operand 2, single buffered']
    #allocation8 [shape = 'u8[512]{0}', space=vmem, size = 0x400, scoped, tag = 'output window, operand 0, single buffered']
    %8 = vsyncpa [#allocation3], 0
    %9 = vsyncpa [#allocation6], 0
    %10 = vsyncpa [#allocation4], 0
    // Predicated region
    $region2: #{tpu_custom_call.1} parent=1 // pred_check
      _
    $region3: #{tpu_custom_call.1} parent=1 // pred_check_branch
      %12 = sbr.rel (0) target = $region5
    $region4: #{tpu_custom_call.1} parent=1 // pred_region
      %s14 = ssub.s32 2048, 2048
      %15 = vsyncadd [#allocation3], %s14
      %s16 = sshll.u32 [#allocation2], 4
      %s17 = int_to_ptr.vmem [resolvable:$true] %s16
      %22 = dma.hbm_to_vmem [thread:$0]  %s0, 2048, %s17, [#allocation3], 128, 128, 8
    $region5: #{tpu_custom_call.1} parent=1 // pred_fallthru
      _
    // Predicated region
    $region6: #{tpu_custom_call.1} parent=1 // pred_check
      _
    $region7: #{tpu_custom_call.1} parent=1 // pred_check_branch
      %24 = sbr.rel (0) target = $region9
    $region8: #{tpu_custom_call.1} parent=1 // pred_region
      %s26 = ssub.s32 256, 256
      %27 = vsyncadd [#allocation6], %s26
      %s28 = sshll.u32 [#allocation5], 4
      %s29 = int_to_ptr.vmem [resolvable:$true] %s28
      %34 = dma.hbm_to_vmem [thread:$0]  %s1, 256, %s29, [#allocation6], 128, 128, 8
    $region9: #{tpu_custom_call.1} parent=1 // pred_fallthru
      _
    // Predicated region
    $region10: #{tpu_custom_call.1} parent=1 // pred_check
      _
    $region11: #{tpu_custom_call.1} parent=1 // pred_check_branch
      %36 = sbr.rel (0) target = $region13
    $region12: #{tpu_custom_call.1} parent=1 // pred_region
      %s38 = ssub.s32 512, 512
      %39 = vsyncadd [#allocation6], %s38
      %s40 = sshll.u32 [#allocation7], 4
      %s41 = int_to_ptr.vmem [resolvable:$true] %s40
      %46 = dma.hbm_to_vmem [thread:$0]  %s2, 512, %s41, [#allocation6], 128, 128, 8
    $region13: #{tpu_custom_call.1} parent=1 // pred_fallthru
      _
    // Predicated region
    $region14: #{tpu_custom_call.1} parent=1 // pred_check
      _
    $region15: #{tpu_custom_call.1} parent=1 // pred_check_branch
      %48 = sbr.rel (0) target = $region17
    $region16: #{tpu_custom_call.1} parent=1 // pred_region
      %49 = dma.done [#allocation3], 2048
    $region17: #{tpu_custom_call.1} parent=1 // pred_fallthru
      _
    // Predicated region
    $region18: #{tpu_custom_call.1} parent=1 // pred_check
      _
    $region19: #{tpu_custom_call.1} parent=1 // pred_check_branch
      %51 = sbr.rel (0) target = $region21
    $region20: #{tpu_custom_call.1} parent=1 // pred_region
      %52 = dma.done [#allocation6], 256
    $region21: #{tpu_custom_call.1} parent=1 // pred_fallthru
      _
    // Predicated region
    $region22: #{tpu_custom_call.1} parent=1 // pred_check
      _
    $region23: #{tpu_custom_call.1} parent=1 // pred_check_branch
      %54 = sbr.rel (0) target = $region25
    $region24: #{tpu_custom_call.1} parent=1 // pred_region
      %55 = dma.done [#allocation6], 512
    $region25: #{tpu_custom_call.1} parent=1 // pred_fallthru
      _
    %v56 = vld [vmem:[#allocation2] sm:$0xff]
    %v57 = vld [vmem:[#allocation2 + $0x8] sm:$0xff]
    %v58 = vld [vmem:[#allocation2 + $0x10] sm:$0xff]
    %v59 = vld [vmem:[#allocation2 + $0x18] sm:$0xff]
    %v60 = vld [vmem:[#allocation2 + $0x20] sm:$0xff]
    %v61 = vld [vmem:[#allocation2 + $0x28] sm:$0xff]
    %v62 = vld [vmem:[#allocation2 + $0x30] sm:$0xff]
    %v63 = vld [vmem:[#allocation2 + $0x38] sm:$0xff]
    %v64 = vld [vmem:[#allocation2 + $0x40] sm:$0xff]
    %v65 = vld [vmem:[#allocation2 + $0x48] sm:$0xff]
    %v66 = vld [vmem:[#allocation2 + $0x50] sm:$0xff]
    %v67 = vld [vmem:[#allocation2 + $0x58] sm:$0xff]
    %v68 = vld [vmem:[#allocation2 + $0x60] sm:$0xff]
    %v69 = vld [vmem:[#allocation2 + $0x68] sm:$0xff]
    %v70 = vld [vmem:[#allocation2 + $0x70] sm:$0xff]
    %v71 = vld [vmem:[#allocation2 + $0x78] sm:$0xff]
    %v72 = vld [vmem:[#allocation5] sm:$0xff]
    %v73 = vld [vmem:[#allocation5 + $0x8] sm:$0xff]
    %v74 = vld [vmem:[#allocation7] sm:$0xff]
    %v75 = vld [vmem:[#allocation7 + $0x8] sm:$0xff]
    %v76 = vld [vmem:[#allocation7 + $0x10] sm:$0xff]
    %v77 = vld [vmem:[#allocation7 + $0x18] sm:$0xff]
    %v78 = vmul.f32 %v56, 0.17677669
    %v79 = vmul.f32 %v58, 0.17677669
    %v80 = vmul.f32 %v60, 0.17677669
    %v81 = vmul.f32 %v62, 0.17677669
    %v82 = vmul.f32 %v64, 0.17677669
    %v83 = vmul.f32 %v66, 0.17677669
    %v84 = vmul.f32 %v68, 0.17677669
    %v85 = vmul.f32 %v70, 0.17677669
    %v94 = vrot.slane %v79, 7
    %vm95 = vcmask 1041409
    %v96 = vsel %vm95, %v94, %v78
    %v97 = vrot.slane %v80, 6
    %vm98 = vcmask 1042434
    %v99 = vsel %vm98, %v97, %v96
    %v100 = vrot.slane %v81, 5
    %vm101 = vcmask 1043459
    %v102 = vsel %vm101, %v100, %v99
    %v103 = vrot.slane %v82, 4
    %vm104 = vcmask 1044484
    %v105 = vsel %vm104, %v103, %v102
    %v106 = vrot.slane %v83, 3
    %vm107 = vcmask 1045509
    %v108 = vsel %vm107, %v106, %v105
    %v109 = vrot.slane %v84, 2
    %vm110 = vcmask 1046534
    %v111 = vsel %vm110, %v109, %v108
    %v112 = vrot.slane %v85, 1
    %vm113 = vcmask 1047559
    %v114 = vsel %vm113, %v112, %v111
    %vm115 = vcmask 261120
    %v116 = vsel %vm115, %v114, 0
    %118 = vmatprep.subr.mxu0 0.0
    %119 = vmatpush1.msra.mxu0 %v74
    %120 = vmatprep.subr.mxu0 0.0
    %121 = vmatpush1.msra.mxu0 %v75
    %122 = vmatprep.subr.mxu0 0.0
    %123 = vmatpush1.msra.mxu0 %v76
    %124 = vmatprep.subr.mxu0 0.0
    %125 = vmatpush1.msra.mxu0 %v77
    %126 = vmatprep.subr.mxu0 0.0
    %127 = vmatpush1.msra.mxu0 0.0
    %128 = vmatprep.subr.mxu0 0.0
    %129 = vmatpush1.msra.mxu0 0.0
    %130 = vmatprep.subr.mxu0 0.0
    %131 = vmatpush1.msra.mxu0 0.0
    %132 = vmatprep.subr.mxu0 0.0
    %133 = vmatpush1.msra.mxu0 0.0
    %134 = vmatprep.subr.mxu0 0.0
    %135 = vmatpush1.msra.mxu0 0.0
    %136 = vmatprep.subr.mxu0 0.0
    %137 = vmatpush1.msra.mxu0 0.0
    %138 = vmatprep.subr.mxu0 0.0
    %139 = vmatpush1.msra.mxu0 0.0
    %140 = vmatprep.subr.mxu0 0.0
    %141 = vmatpush1.msra.mxu0 0.0
    %142 = vmatprep.subr.mxu0 0.0
    %143 = vmatpush1.msra.mxu0 0.0
    %144 = vmatprep.subr.mxu0 0.0
    %145 = vmatpush1.msra.mxu0 0.0
    %146 = vmatprep.subr.mxu0 0.0
    %147 = vmatpush1.msra.mxu0 0.0
    %148 = vmatprep.subr.mxu0 0.0
    %149 = vmatpush1.msra.mxu0 0.0
    %150 = vmatprep.subr.mxu0 0.0
    %151 = vmatpush1.msra.mxu0 0.0
    %152 = vmatprep.subr.mxu0 0.0
    %153 = vmatpush1.msra.mxu0 0.0
    %154 = vmatprep.subr.mxu0 0.0
    %155 = vmatpush1.msra.mxu0 0.0
    %156 = vmatprep.subr.mxu0 0.0
    %157 = vmatpush1.msra.mxu0 0.0
    %158 = vmatprep.subr.mxu0 0.0
    %159 = vmatpush1.msra.mxu0 0.0
    %160 = vmatprep.subr.mxu0 0.0
    %161 = vmatpush1.msra.mxu0 0.0
    %162 = vmatprep.subr.mxu0 0.0
    %163 = vmatpush1.msra.mxu0 0.0
    %164 = vmatprep.subr.mxu0 0.0
    %165 = vmatpush1.msra.mxu0 0.0
    %166 = vmatprep.subr.mxu0 0.0
    %167 = vmatpush1.msra.mxu0 0.0
    %168 = vmatprep.subr.mxu0 0.0
    %169 = vmatpush1.msra.mxu0 0.0
    %170 = vmatprep.subr.mxu0 0.0
    %171 = vmatpush1.msra.mxu0 0.0
    %172 = vmatprep.subr.mxu0 0.0
    %173 = vmatpush1.msra.mxu0 0.0
    %174 = vmatprep.subr.mxu0 0.0
    %175 = vmatpush1.msra.mxu0 0.0
    %176 = vmatprep.subr.mxu0 0.0
    %177 = vmatpush1.msra.mxu0 0.0
    %178 = vmatprep.subr.mxu0 0.0
    %179 = vmatpush1.msra.mxu0 0.0
    %180 = vmatprep.subr.mxu0 0.0
    %181 = vmatpush1.msra.mxu0 0.0
    %182 = vmatprep.mubr.f32.mxu0 0.0
    %183 = vmatmul.mubr.f32.gmra.mrb[0].mxu0 %v116
    %v184 = vpop.f32.mrb[0].mxu0
    %v185 = vadd.f32 0.0, %v184
    %v186 = vpop.f32.mrb[0].mxu0
    %187 = vdwg.mxu0
    %v188 = vlaneseq
    %v189 = vshrl.u32 %v188, 7
    %v190 = vsub.s32 0, %v189
    %v191 = vrot.slane %v78, %v190
    %v192 = vlaneseq
    %v193 = vshrl.u32 %v192, 7
    %v194 = vsub.s32 0, %v193
    %v195 = vrot.slane %v79, %v194
    %v196 = vlaneseq
    %v197 = vshrl.u32 %v196, 7
    %v198 = vsub.s32 0, %v197
    %v199 = vrot.slane %v80, %v198
    %v200 = vlaneseq
    %v201 = vshrl.u32 %v200, 7
    %v202 = vsub.s32 0, %v201
    %v203 = vrot.slane %v81, %v202
    %v204 = vlaneseq
    %v205 = vshrl.u32 %v204, 7
    %v206 = vsub.s32 0, %v205
    %v207 = vrot.slane %v82, %v206
    %v208 = vlaneseq
    %v209 = vshrl.u32 %v208, 7
    %v210 = vsub.s32 0, %v209
    %v211 = vrot.slane %v83, %v210
    %v212 = vlaneseq
    %v213 = vshrl.u32 %v212, 7
    %v214 = vsub.s32 0, %v213
    %v215 = vrot.slane %v84, %v214
    %v216 = vlaneseq
    %v217 = vshrl.u32 %v216, 7
    %v218 = vsub.s32 0, %v217
    %v219 = vrot.slane %v85, %v218
    %v220 = vmul.f32 %v191, %v56
    %v221 = vmul.f32 %v191, %v57
    %v222 = vmul.f32 %v195, %v58
    %v223 = vmul.f32 %v195, %v59
    %v224 = vmul.f32 %v199, %v60
    %v225 = vmul.f32 %v199, %v61
    %v226 = vmul.f32 %v203, %v62
    %v227 = vmul.f32 %v203, %v63
    %v228 = vmul.f32 %v207, %v64
    %v229 = vmul.f32 %v207, %v65
    %v230 = vmul.f32 %v211, %v66
    %v231 = vmul.f32 %v211, %v67
    %v232 = vmul.f32 %v215, %v68
    %v233 = vmul.f32 %v215, %v69
    %v234 = vmul.f32 %v219, %v70
    %v235 = vmul.f32 %v219, %v71
    %v236 = vsel %vm115, %v220, 0.0
    %237 = vadd.xlane.f32.xlu0 %v236
    %v238 = vpop.xlane.xlu0 %237
    %v239 = vsel %vm115, %v221, 0.0
    %240 = vadd.xlane.f32.xlu0 %v239
    %v241 = vpop.xlane.xlu0 %240
    %v242 = vsel %vm115, %v222, 0.0
    %243 = vadd.xlane.f32.xlu0 %v242
    %v244 = vpop.xlane.xlu0 %243
    %v245 = vsel %vm115, %v223, 0.0
    %246 = vadd.xlane.f32.xlu0 %v245
    %v247 = vpop.xlane.xlu0 %246
    %v248 = vsel %vm115, %v224, 0.0
    %249 = vadd.xlane.f32.xlu0 %v248
    %v250 = vpop.xlane.xlu0 %249
    %v251 = vsel %vm115, %v225, 0.0
    %252 = vadd.xlane.f32.xlu0 %v251
    %v253 = vpop.xlane.xlu0 %252
    %v254 = vsel %vm115, %v226, 0.0
    %255 = vadd.xlane.f32.xlu0 %v254
    %v256 = vpop.xlane.xlu0 %255
    %v257 = vsel %vm115, %v227, 0.0
    %258 = vadd.xlane.f32.xlu0 %v257
    %v259 = vpop.xlane.xlu0 %258
    %v260 = vsel %vm115, %v228, 0.0
    %261 = vadd.xlane.f32.xlu0 %v260
    %v262 = vpop.xlane.xlu0 %261
    %v263 = vsel %vm115, %v229, 0.0
    %264 = vadd.xlane.f32.xlu0 %v263
    %v265 = vpop.xlane.xlu0 %264
    %v266 = vsel %vm115, %v230, 0.0
    %267 = vadd.xlane.f32.xlu0 %v266
    %v268 = vpop.xlane.xlu0 %267
    %v269 = vsel %vm115, %v231, 0.0
    %270 = vadd.xlane.f32.xlu0 %v269
    %v271 = vpop.xlane.xlu0 %270
    %v272 = vsel %vm115, %v232, 0.0
    %273 = vadd.xlane.f32.xlu0 %v272
    %v274 = vpop.xlane.xlu0 %273
    %v275 = vsel %vm115, %v233, 0.0
    %276 = vadd.xlane.f32.xlu0 %v275
    %v277 = vpop.xlane.xlu0 %276
    %v278 = vsel %vm115, %v234, 0.0
    %279 = vadd.xlane.f32.xlu0 %v278
    %v280 = vpop.xlane.xlu0 %279
    %v281 = vsel %vm115, %v235, 0.0
    %282 = vadd.xlane.f32.xlu0 %v281
    %v283 = vpop.xlane.xlu0 %282
    %v285 = vcombine.high %v185, %v185
    %v287 = vunpack.c.l.s4 1966171168
    %v288 = vunpack.c.0.s8 %v287
    %v289 = vlaneseq
    %v290 = vshrl.u32 %v289, 7
    %v291 = vsub.s32 %v288, %v290
    %v292 = vrot.slane %v185, %v291
    %v294 = vunpack.c.l.s4 1966171168
    %v295 = vunpack.c.0.s8 %v294
    %v296 = vlaneseq
    %v297 = vshrl.u32 %v296, 7
    %v298 = vsub.s32 %v295, %v297
    %v299 = vrot.slane %v285, %v298
    %v300 = vcombine.high %v292, %v292
    %v301 = vcombine.high %v299, %v299
    %v303 = vunpack.c.l.s4 1966171168
    %v304 = vunpack.c.0.s8 %v303
    %v305 = vlaneseq
    %v306 = vshrl.u32 %v305, 7
    %v307 = vsub.s32 %v304, %v306
    %v308 = vrot.slane %v292, %v307
    %v310 = vunpack.c.l.s4 1966171168
    %v311 = vunpack.c.0.s8 %v310
    %v312 = vlaneseq
    %v313 = vshrl.u32 %v312, 7
    %v314 = vsub.s32 %v311, %v313
    %v315 = vrot.slane %v299, %v314
    %v317 = vunpack.c.l.s4 1966171168
    %v318 = vunpack.c.0.s8 %v317
    %v319 = vlaneseq
    %v320 = vshrl.u32 %v319, 7
    %v321 = vsub.s32 %v318, %v320
    %v322 = vrot.slane %v300, %v321
    %v324 = vunpack.c.l.s4 1966171168
    %v325 = vunpack.c.0.s8 %v324
    %v326 = vlaneseq
    %v327 = vshrl.u32 %v326, 7
    %v328 = vsub.s32 %v325, %v327
    %v329 = vrot.slane %v301, %v328
    %v330 = vcombine.high %v308, %v308
    %v331 = vcombine.high %v315, %v315
    %v332 = vcombine.high %v322, %v322
    %v333 = vcombine.high %v329, %v329
    %v334 = vlaneseq
    %v335 = vshrl.u32 %v334, 7
    %v336 = vsub.s32 0, %v335
    %v337 = vrot.slane %v308, %v336
    %v338 = vlaneseq
    %v339 = vshrl.u32 %v338, 7
    %v340 = vsub.s32 0, %v339
    %v341 = vrot.slane %v322, %v340
    %v342 = vlaneseq
    %v343 = vshrl.u32 %v342, 7
    %v344 = vsub.s32 0, %v343
    %v345 = vrot.slane %v330, %v344
    %v346 = vlaneseq
    %v347 = vshrl.u32 %v346, 7
    %v348 = vsub.s32 0, %v347
    %v349 = vrot.slane %v332, %v348
    %v350 = vlaneseq
    %v351 = vshrl.u32 %v350, 7
    %v352 = vsub.s32 0, %v351
    %v353 = vrot.slane %v315, %v352
    %v354 = vlaneseq
    %v355 = vshrl.u32 %v354, 7
    %v356 = vsub.s32 0, %v355
    %v357 = vrot.slane %v329, %v356
    %v358 = vlaneseq
    %v359 = vshrl.u32 %v358, 7
    %v360 = vsub.s32 0, %v359
    %v361 = vrot.slane %v331, %v360
    %v362 = vlaneseq
    %v363 = vshrl.u32 %v362, 7
    %v364 = vsub.s32 0, %v363
    %v365 = vrot.slane %v333, %v364
    %v374 = vmul.f32 %v337, %v56
    %v375 = vmul.f32 %v337, %v57
    %v376 = vmul.f32 %v341, %v58
    %v377 = vmul.f32 %v341, %v59
    %v378 = vmul.f32 %v345, %v60
    %v379 = vmul.f32 %v345, %v61
    %v380 = vmul.f32 %v349, %v62
    %v381 = vmul.f32 %v349, %v63
    %v382 = vmul.f32 %v353, %v64
    %v383 = vmul.f32 %v353, %v65
    %v384 = vmul.f32 %v357, %v66
    %v385 = vmul.f32 %v357, %v67
    %v386 = vmul.f32 %v361, %v68
    %v387 = vmul.f32 %v361, %v69
    %v388 = vmul.f32 %v365, %v70
    %v389 = vmul.f32 %v365, %v71
    %v390 = vsel %vm115, %v374, 0.0
    %391 = vadd.xlane.f32.xlu0 %v390
    %v392 = vpop.xlane.xlu0 %391
    %v393 = vsel %vm115, %v375, 0.0
    %394 = vadd.xlane.f32.xlu0 %v393
    %v395 = vpop.xlane.xlu0 %394
    %v396 = vsel %vm115, %v376, 0.0
    %397 = vadd.xlane.f32.xlu0 %v396
    %v398 = vpop.xlane.xlu0 %397
    %v399 = vsel %vm115, %v377, 0.0
    %400 = vadd.xlane.f32.xlu0 %v399
    %v401 = vpop.xlane.xlu0 %400
    %v402 = vsel %vm115, %v378, 0.0
    %403 = vadd.xlane.f32.xlu0 %v402
    %v404 = vpop.xlane.xlu0 %403
    %v405 = vsel %vm115, %v379, 0.0
    %406 = vadd.xlane.f32.xlu0 %v405
    %v407 = vpop.xlane.xlu0 %406
    %v408 = vsel %vm115, %v380, 0.0
    %409 = vadd.xlane.f32.xlu0 %v408
    %v410 = vpop.xlane.xlu0 %409
    %v411 = vsel %vm115, %v381, 0.0
    %412 = vadd.xlane.f32.xlu0 %v411
    %v413 = vpop.xlane.xlu0 %412
    %v414 = vsel %vm115, %v382, 0.0
    %415 = vadd.xlane.f32.xlu0 %v414
    %v416 = vpop.xlane.xlu0 %415
    %v417 = vsel %vm115, %v383, 0.0
    %418 = vadd.xlane.f32.xlu0 %v417
    %v419 = vpop.xlane.xlu0 %418
    %v420 = vsel %vm115, %v384, 0.0
    %421 = vadd.xlane.f32.xlu0 %v420
    %v422 = vpop.xlane.xlu0 %421
    %v423 = vsel %vm115, %v385, 0.0
    %424 = vadd.xlane.f32.xlu0 %v423
    %v425 = vpop.xlane.xlu0 %424
    %v426 = vsel %vm115, %v386, 0.0
    %427 = vadd.xlane.f32.xlu0 %v426
    %v428 = vpop.xlane.xlu0 %427
    %v429 = vsel %vm115, %v387, 0.0
    %430 = vadd.xlane.f32.xlu0 %v429
    %v431 = vpop.xlane.xlu0 %430
    %v432 = vsel %vm115, %v388, 0.0
    %433 = vadd.xlane.f32.xlu0 %v432
    %v434 = vpop.xlane.xlu0 %433
    %v435 = vsel %vm115, %v389, 0.0
    %436 = vadd.xlane.f32.xlu0 %v435
    %v437 = vpop.xlane.xlu0 %436
    %vm438 = vcmp.gt.f32.partialorder %v72, 0.0
    %v455 = vlaneseq
    %v456 = vand.u32 %v455, 127
    %v457 = vlaneseq
    %v458 = vshrl.u32 %v457, 7
    %v459 = vsub.s32 %v456, %v458
    %v460 = vrot.slane %v238, %v459
    %v461 = vadd.s32 %v456, 4294967288
    %v462 = vlaneseq
    %v463 = vshrl.u32 %v462, 7
    %v464 = vsub.s32 %v461, %v463
    %v465 = vrot.slane %v241, %v464
    %vm466 = vcmask 130112
    %v467 = vsel %vm466, %v465, %v460
    %v468 = vlaneseq
    %v469 = vshrl.u32 %v468, 7
    %v470 = vsub.s32 %v456, %v469
    %v471 = vrot.slane %v244, %v470
    %v472 = vlaneseq
    %v473 = vshrl.u32 %v472, 7
    %v474 = vsub.s32 %v461, %v473
    %v475 = vrot.slane %v247, %v474
    %v476 = vsel %vm466, %v475, %v471
    %v477 = vlaneseq
    %v478 = vshrl.u32 %v477, 7
    %v479 = vsub.s32 %v456, %v478
    %v480 = vrot.slane %v250, %v479
    %v481 = vlaneseq
    %v482 = vshrl.u32 %v481, 7
    %v483 = vsub.s32 %v461, %v482
    %v484 = vrot.slane %v253, %v483
    %v485 = vsel %vm466, %v484, %v480
    %v486 = vlaneseq
    %v487 = vshrl.u32 %v486, 7
    %v488 = vsub.s32 %v456, %v487
    %v489 = vrot.slane %v256, %v488
    %v490 = vlaneseq
    %v491 = vshrl.u32 %v490, 7
    %v492 = vsub.s32 %v461, %v491
    %v493 = vrot.slane %v259, %v492
    %v494 = vsel %vm466, %v493, %v489
    %v495 = vlaneseq
    %v496 = vshrl.u32 %v495, 7
    %v497 = vsub.s32 %v456, %v496
    %v498 = vrot.slane %v262, %v497
    %v499 = vlaneseq
    %v500 = vshrl.u32 %v499, 7
    %v501 = vsub.s32 %v461, %v500
    %v502 = vrot.slane %v265, %v501
    %v503 = vsel %vm466, %v502, %v498
    %v504 = vlaneseq
    %v505 = vshrl.u32 %v504, 7
    %v506 = vsub.s32 %v456, %v505
    %v507 = vrot.slane %v268, %v506
    %v508 = vlaneseq
    %v509 = vshrl.u32 %v508, 7
    %v510 = vsub.s32 %v461, %v509
    %v511 = vrot.slane %v271, %v510
    %v512 = vsel %vm466, %v511, %v507
    %v513 = vlaneseq
    %v514 = vshrl.u32 %v513, 7
    %v515 = vsub.s32 %v456, %v514
    %v516 = vrot.slane %v274, %v515
    %v517 = vlaneseq
    %v518 = vshrl.u32 %v517, 7
    %v519 = vsub.s32 %v461, %v518
    %v520 = vrot.slane %v277, %v519
    %v521 = vsel %vm466, %v520, %v516
    %v522 = vlaneseq
    %v523 = vshrl.u32 %v522, 7
    %v524 = vsub.s32 %v456, %v523
    %v525 = vrot.slane %v280, %v524
    %v526 = vlaneseq
    %v527 = vshrl.u32 %v526, 7
    %v528 = vsub.s32 %v461, %v527
    %v529 = vrot.slane %v283, %v528
    %v530 = vsel %vm466, %v529, %v525
    %v531 = vsel %vm95, %v476, %v467
    %v532 = vsel %vm98, %v485, %v531
    %v533 = vsel %vm101, %v494, %v532
    %v534 = vsel %vm104, %v503, %v533
    %v535 = vsel %vm107, %v512, %v534
    %v536 = vsel %vm110, %v521, %v535
    %v537 = vsel %vm113, %v530, %v536
    %v539 = vsel %vm438, %v537, -3.4028235e+38
    %vm540 = vcmask 130048
    %v541 = vsel %vm540, %v539, -inf
    %542 = vmax.xlane.f32.xlu0 %v541
    %v543 = vpop.xlane.xlu0 %542
    %v544 = vsub.f32 %v539, %v543
    %v545 = vmul.f32 %v544, 1.442695
    %v546 = vpow.pop %v545
    %v547 = vsel %vm540, %v546, 0.0
    %548 = vadd.xlane.f32.xlu0 %v547
    %v549 = vpop.xlane.xlu0 %548
    %v550 = vrcp.pop %v549
    %v551 = vmul.f32 %v546, %v550
    %v552 = vsel %vm438, %v551, 0.0
    %vm553 = vcmp.gt.f32.partialorder %v73, 0.0
    %v570 = vlaneseq
    %v571 = vshrl.u32 %v570, 7
    %v572 = vsub.s32 %v456, %v571
    %v573 = vrot.slane %v392, %v572
    %v574 = vlaneseq
    %v575 = vshrl.u32 %v574, 7
    %v576 = vsub.s32 %v461, %v575
    %v577 = vrot.slane %v395, %v576
    %v578 = vsel %vm466, %v577, %v573
    %v579 = vlaneseq
    %v580 = vshrl.u32 %v579, 7
    %v581 = vsub.s32 %v456, %v580
    %v582 = vrot.slane %v398, %v581
    %v583 = vlaneseq
    %v584 = vshrl.u32 %v583, 7
    %v585 = vsub.s32 %v461, %v584
    %v586 = vrot.slane %v401, %v585
    %v587 = vsel %vm466, %v586, %v582
    %v588 = vlaneseq
    %v589 = vshrl.u32 %v588, 7
    %v590 = vsub.s32 %v456, %v589
    %v591 = vrot.slane %v404, %v590
    %v592 = vlaneseq
    %v593 = vshrl.u32 %v592, 7
    %v594 = vsub.s32 %v461, %v593
    %v595 = vrot.slane %v407, %v594
    %v596 = vsel %vm466, %v595, %v591
    %v597 = vlaneseq
    %v598 = vshrl.u32 %v597, 7
    %v599 = vsub.s32 %v456, %v598
    %v600 = vrot.slane %v410, %v599
    %v601 = vlaneseq
    %v602 = vshrl.u32 %v601, 7
    %v603 = vsub.s32 %v461, %v602
    %v604 = vrot.slane %v413, %v603
    %v605 = vsel %vm466, %v604, %v600
    %v606 = vlaneseq
    %v607 = vshrl.u32 %v606, 7
    %v608 = vsub.s32 %v456, %v607
    %v609 = vrot.slane %v416, %v608
    %v610 = vlaneseq
    %v611 = vshrl.u32 %v610, 7
    %v612 = vsub.s32 %v461, %v611
    %v613 = vrot.slane %v419, %v612
    %v614 = vsel %vm466, %v613, %v609
    %v615 = vlaneseq
    %v616 = vshrl.u32 %v615, 7
    %v617 = vsub.s32 %v456, %v616
    %v618 = vrot.slane %v422, %v617
    %v619 = vlaneseq
    %v620 = vshrl.u32 %v619, 7
    %v621 = vsub.s32 %v461, %v620
    %v622 = vrot.slane %v425, %v621
    %v623 = vsel %vm466, %v622, %v618
    %v624 = vlaneseq
    %v625 = vshrl.u32 %v624, 7
    %v626 = vsub.s32 %v456, %v625
    %v627 = vrot.slane %v428, %v626
    %v628 = vlaneseq
    %v629 = vshrl.u32 %v628, 7
    %v630 = vsub.s32 %v461, %v629
    %v631 = vrot.slane %v431, %v630
    %v632 = vsel %vm466, %v631, %v627
    %v633 = vlaneseq
    %v634 = vshrl.u32 %v633, 7
    %v635 = vsub.s32 %v456, %v634
    %v636 = vrot.slane %v434, %v635
    %v637 = vlaneseq
    %v638 = vshrl.u32 %v637, 7
    %v639 = vsub.s32 %v461, %v638
    %v640 = vrot.slane %v437, %v639
    %v641 = vsel %vm466, %v640, %v636
    %v642 = vsel %vm95, %v587, %v578
    %v643 = vsel %vm98, %v596, %v642
    %v644 = vsel %vm101, %v605, %v643
    %v645 = vsel %vm104, %v614, %v644
    %v646 = vsel %vm107, %v623, %v645
    %v647 = vsel %vm110, %v632, %v646
    %v648 = vsel %vm113, %v641, %v647
    %v650 = vsel %vm553, %v648, -3.4028235e+38
    %v651 = vsel %vm540, %v650, -inf
    %652 = vmax.xlane.f32.xlu0 %v651
    %v653 = vpop.xlane.xlu0 %652
    %v654 = vsub.f32 %v650, %v653
    %v655 = vmul.f32 %v654, 1.442695
    %v656 = vpow.pop %v655
    %v657 = vsel %vm540, %v656, 0.0
    %658 = vadd.xlane.f32.xlu0 %v657
    %v659 = vpop.xlane.xlu0 %658
    %v660 = vrcp.pop %v659
    %v661 = vmul.f32 %v656, %v660
    %v662 = vsel %vm553, %v661, 0.0
    %v663 = vlaneseq
    %v664 = vshrl.u32 %v663, 7
    %v665 = vsub.s32 0, %v664
    %v666 = vrot.slane %v552, %v665
    %668 = vbcast.lane.b32.xlu0 %v666, 256
    %v669 = vpop.permute.xlu0 %668
    %s671 = sor.u32 256, 8
    %672 = vbcast.lane.b32.xlu0 %v666, %s671
    %v673 = vpop.permute.xlu0 %672
    %v674 = vlaneseq
    %v675 = vshrl.u32 %v674, 7
    %v676 = vsub.s32 1, %v675
    %v677 = vrot.slane %v552, %v676
    %679 = vbcast.lane.b32.xlu0 %v677, 256
    %v680 = vpop.permute.xlu0 %679
    %s682 = sor.u32 256, 8
    %683 = vbcast.lane.b32.xlu0 %v677, %s682
    %v684 = vpop.permute.xlu0 %683
    %v685 = vlaneseq
    %v686 = vshrl.u32 %v685, 7
    %v687 = vsub.s32 2, %v686
    %v688 = vrot.slane %v552, %v687
    %690 = vbcast.lane.b32.xlu0 %v688, 256
    %v691 = vpop.permute.xlu0 %690
    %s693 = sor.u32 256, 8
    %694 = vbcast.lane.b32.xlu0 %v688, %s693
    %v695 = vpop.permute.xlu0 %694
    %v696 = vlaneseq
    %v697 = vshrl.u32 %v696, 7
    %v698 = vsub.s32 3, %v697
    %v699 = vrot.slane %v552, %v698
    %701 = vbcast.lane.b32.xlu0 %v699, 256
    %v702 = vpop.permute.xlu0 %701
    %s704 = sor.u32 256, 8
    %705 = vbcast.lane.b32.xlu0 %v699, %s704
    %v706 = vpop.permute.xlu0 %705
    %v707 = vlaneseq
    %v708 = vshrl.u32 %v707, 7
    %v709 = vsub.s32 4, %v708
    %v710 = vrot.slane %v552, %v709
    %712 = vbcast.lane.b32.xlu0 %v710, 256
    %v713 = vpop.permute.xlu0 %712
    %s715 = sor.u32 256, 8
    %716 = vbcast.lane.b32.xlu0 %v710, %s715
    %v717 = vpop.permute.xlu0 %716
    %v718 = vlaneseq
    %v719 = vshrl.u32 %v718, 7
    %v720 = vsub.s32 5, %v719
    %v721 = vrot.slane %v552, %v720
    %723 = vbcast.lane.b32.xlu0 %v721, 256
    %v724 = vpop.permute.xlu0 %723
    %s726 = sor.u32 256, 8
    %727 = vbcast.lane.b32.xlu0 %v721, %s726
    %v728 = vpop.permute.xlu0 %727
    %v729 = vlaneseq
    %v730 = vshrl.u32 %v729, 7
    %v731 = vsub.s32 6, %v730
    %v732 = vrot.slane %v552, %v731
    %734 = vbcast.lane.b32.xlu0 %v732, 256
    %v735 = vpop.permute.xlu0 %734
    %s737 = sor.u32 256, 8
    %738 = vbcast.lane.b32.xlu0 %v732, %s737
    %v739 = vpop.permute.xlu0 %738
    %v740 = vlaneseq
    %v741 = vshrl.u32 %v740, 7
    %v742 = vsub.s32 7, %v741
    %v743 = vrot.slane %v552, %v742
    %745 = vbcast.lane.b32.xlu0 %v743, 256
    %v746 = vpop.permute.xlu0 %745
    %s748 = sor.u32 256, 8
    %749 = vbcast.lane.b32.xlu0 %v743, %s748
    %v750 = vpop.permute.xlu0 %749
    %v751 = vmul.f32 %v669, %v56
    %v752 = vmul.f32 %v673, %v57
    %v753 = vmul.f32 %v680, %v58
    %v754 = vmul.f32 %v684, %v59
    %v755 = vmul.f32 %v691, %v60
    %v756 = vmul.f32 %v695, %v61
    %v757 = vmul.f32 %v702, %v62
    %v758 = vmul.f32 %v706, %v63
    %v759 = vmul.f32 %v713, %v64
    %v760 = vmul.f32 %v717, %v65
    %v761 = vmul.f32 %v724, %v66
    %v762 = vmul.f32 %v728, %v67
    %v763 = vmul.f32 %v735, %v68
    %v764 = vmul.f32 %v739, %v69
    %v765 = vmul.f32 %v746, %v70
    %v766 = vmul.f32 %v750, %v71
    %v767 = vsel %vm115, %v751, 0.0
    %v768 = vsel %vm115, %v752, 0.0
    %v769 = vadd.f32 %v767, %v768
    %v770 = vrot.slane %v769, 4
    %v771 = vadd.f32 %v769, %v770
    %v772 = vrot.slane %v771, 2
    %v773 = vadd.f32 %v771, %v772
    %v774 = vrot.slane %v773, 1
    %v775 = vadd.f32 %v773, %v774
    %v776 = vsel %vm115, %v753, 0.0
    %v777 = vsel %vm115, %v754, 0.0
    %v778 = vadd.f32 %v776, %v777
    %v779 = vrot.slane %v778, 4
    %v780 = vadd.f32 %v778, %v779
    %v781 = vrot.slane %v780, 2
    %v782 = vadd.f32 %v780, %v781
    %v783 = vrot.slane %v782, 1
    %v784 = vadd.f32 %v782, %v783
    %v785 = vsel %vm115, %v755, 0.0
    %v786 = vsel %vm115, %v756, 0.0
    %v787 = vadd.f32 %v785, %v786
    %v788 = vrot.slane %v787, 4
    %v789 = vadd.f32 %v787, %v788
    %v790 = vrot.slane %v789, 2
    %v791 = vadd.f32 %v789, %v790
    %v792 = vrot.slane %v791, 1
    %v793 = vadd.f32 %v791, %v792
    %v794 = vsel %vm115, %v757, 0.0
    %v795 = vsel %vm115, %v758, 0.0
    %v796 = vadd.f32 %v794, %v795
    %v797 = vrot.slane %v796, 4
    %v798 = vadd.f32 %v796, %v797
    %v799 = vrot.slane %v798, 2
    %v800 = vadd.f32 %v798, %v799
    %v801 = vrot.slane %v800, 1
    %v802 = vadd.f32 %v800, %v801
    %v803 = vsel %vm115, %v759, 0.0
    %v804 = vsel %vm115, %v760, 0.0
    %v805 = vadd.f32 %v803, %v804
    %v806 = vrot.slane %v805, 4
    %v807 = vadd.f32 %v805, %v806
    %v808 = vrot.slane %v807, 2
    %v809 = vadd.f32 %v807, %v808
    %v810 = vrot.slane %v809, 1
    %v811 = vadd.f32 %v809, %v810
    %v812 = vsel %vm115, %v761, 0.0
    %v813 = vsel %vm115, %v762, 0.0
    %v814 = vadd.f32 %v812, %v813
    %v815 = vrot.slane %v814, 4
    %v816 = vadd.f32 %v814, %v815
    %v817 = vrot.slane %v816, 2
    %v818 = vadd.f32 %v816, %v817
    %v819 = vrot.slane %v818, 1
    %v820 = vadd.f32 %v818, %v819
    %v821 = vsel %vm115, %v763, 0.0
    %v822 = vsel %vm115, %v764, 0.0
    %v823 = vadd.f32 %v821, %v822
    %v824 = vrot.slane %v823, 4
    %v825 = vadd.f32 %v823, %v824
    %v826 = vrot.slane %v825, 2
    %v827 = vadd.f32 %v825, %v826
    %v828 = vrot.slane %v827, 1
    %v829 = vadd.f32 %v827, %v828
    %v830 = vsel %vm115, %v765, 0.0
    %v831 = vsel %vm115, %v766, 0.0
    %v832 = vadd.f32 %v830, %v831
    %v833 = vrot.slane %v832, 4
    %v834 = vadd.f32 %v832, %v833
    %v835 = vrot.slane %v834, 2
    %v836 = vadd.f32 %v834, %v835
    %v837 = vrot.slane %v836, 1
    %v838 = vadd.f32 %v836, %v837
    %v839 = vlaneseq
    %v840 = vshrl.u32 %v839, 7
    %v841 = vsub.s32 0, %v840
    %v842 = vrot.slane %v662, %v841
    %844 = vbcast.lane.b32.xlu0 %v842, 256
    %v845 = vpop.permute.xlu0 %844
    %s847 = sor.u32 256, 8
    %848 = vbcast.lane.b32.xlu0 %v842, %s847
    %v849 = vpop.permute.xlu0 %848
    %v850 = vlaneseq
    %v851 = vshrl.u32 %v850, 7
    %v852 = vsub.s32 1, %v851
    %v853 = vrot.slane %v662, %v852
    %855 = vbcast.lane.b32.xlu0 %v853, 256
    %v856 = vpop.permute.xlu0 %855
    %s858 = sor.u32 256, 8
    %859 = vbcast.lane.b32.xlu0 %v853, %s858
    %v860 = vpop.permute.xlu0 %859
    %v861 = vlaneseq
    %v862 = vshrl.u32 %v861, 7
    %v863 = vsub.s32 2, %v862
    %v864 = vrot.slane %v662, %v863
    %866 = vbcast.lane.b32.xlu0 %v864, 256
    %v867 = vpop.permute.xlu0 %866
    %s869 = sor.u32 256, 8
    %870 = vbcast.lane.b32.xlu0 %v864, %s869
    %v871 = vpop.permute.xlu0 %870
    %v872 = vlaneseq
    %v873 = vshrl.u32 %v872, 7
    %v874 = vsub.s32 3, %v873
    %v875 = vrot.slane %v662, %v874
    %877 = vbcast.lane.b32.xlu0 %v875, 256
    %v878 = vpop.permute.xlu0 %877
    %s880 = sor.u32 256, 8
    %881 = vbcast.lane.b32.xlu0 %v875, %s880
    %v882 = vpop.permute.xlu0 %881
    %v883 = vlaneseq
    %v884 = vshrl.u32 %v883, 7
    %v885 = vsub.s32 4, %v884
    %v886 = vrot.slane %v662, %v885
    %888 = vbcast.lane.b32.xlu0 %v886, 256
    %v889 = vpop.permute.xlu0 %888
    %s891 = sor.u32 256, 8
    %892 = vbcast.lane.b32.xlu0 %v886, %s891
    %v893 = vpop.permute.xlu0 %892
    %v894 = vlaneseq
    %v895 = vshrl.u32 %v894, 7
    %v896 = vsub.s32 5, %v895
    %v897 = vrot.slane %v662, %v896
    %899 = vbcast.lane.b32.xlu0 %v897, 256
    %v900 = vpop.permute.xlu0 %899
    %s902 = sor.u32 256, 8
    %903 = vbcast.lane.b32.xlu0 %v897, %s902
    %v904 = vpop.permute.xlu0 %903
    %v905 = vlaneseq
    %v906 = vshrl.u32 %v905, 7
    %v907 = vsub.s32 6, %v906
    %v908 = vrot.slane %v662, %v907
    %910 = vbcast.lane.b32.xlu0 %v908, 256
    %v911 = vpop.permute.xlu0 %910
    %s913 = sor.u32 256, 8
    %914 = vbcast.lane.b32.xlu0 %v908, %s913
    %v915 = vpop.permute.xlu0 %914
    %v916 = vlaneseq
    %v917 = vshrl.u32 %v916, 7
    %v918 = vsub.s32 7, %v917
    %v919 = vrot.slane %v662, %v918
    %921 = vbcast.lane.b32.xlu0 %v919, 256
    %v922 = vpop.permute.xlu0 %921
    %s924 = sor.u32 256, 8
    %925 = vbcast.lane.b32.xlu0 %v919, %s924
    %v926 = vpop.permute.xlu0 %925
    %v927 = vmul.f32 %v845, %v56
    %v928 = vmul.f32 %v849, %v57
    %v929 = vmul.f32 %v856, %v58
    %v930 = vmul.f32 %v860, %v59
    %v931 = vmul.f32 %v867, %v60
    %v932 = vmul.f32 %v871, %v61
    %v933 = vmul.f32 %v878, %v62
    %v934 = vmul.f32 %v882, %v63
    %v935 = vmul.f32 %v889, %v64
    %v936 = vmul.f32 %v893, %v65
    %v937 = vmul.f32 %v900, %v66
    %v938 = vmul.f32 %v904, %v67
    %v939 = vmul.f32 %v911, %v68
    %v940 = vmul.f32 %v915, %v69
    %v941 = vmul.f32 %v922, %v70
    %v942 = vmul.f32 %v926, %v71
    %v943 = vsel %vm115, %v927, 0.0
    %v944 = vsel %vm115, %v928, 0.0
    %v945 = vadd.f32 %v943, %v944
    %v946 = vrot.slane %v945, 4
    %v947 = vadd.f32 %v945, %v946
    %v948 = vrot.slane %v947, 2
    %v949 = vadd.f32 %v947, %v948
    %v950 = vrot.slane %v949, 1
    %v951 = vadd.f32 %v949, %v950
    %v952 = vsel %vm115, %v929, 0.0
    %v953 = vsel %vm115, %v930, 0.0
    %v954 = vadd.f32 %v952, %v953
    %v955 = vrot.slane %v954, 4
    %v956 = vadd.f32 %v954, %v955
    %v957 = vrot.slane %v956, 2
    %v958 = vadd.f32 %v956, %v957
    %v959 = vrot.slane %v958, 1
    %v960 = vadd.f32 %v958, %v959
    %v961 = vsel %vm115, %v931, 0.0
    %v962 = vsel %vm115, %v932, 0.0
    %v963 = vadd.f32 %v961, %v962
    %v964 = vrot.slane %v963, 4
    %v965 = vadd.f32 %v963, %v964
    %v966 = vrot.slane %v965, 2
    %v967 = vadd.f32 %v965, %v966
    %v968 = vrot.slane %v967, 1
    %v969 = vadd.f32 %v967, %v968
    %v970 = vsel %vm115, %v933, 0.0
    %v971 = vsel %vm115, %v934, 0.0
    %v972 = vadd.f32 %v970, %v971
    %v973 = vrot.slane %v972, 4
    %v974 = vadd.f32 %v972, %v973
    %v975 = vrot.slane %v974, 2
    %v976 = vadd.f32 %v974, %v975
    %v977 = vrot.slane %v976, 1
    %v978 = vadd.f32 %v976, %v977
    %v979 = vsel %vm115, %v935, 0.0
    %v980 = vsel %vm115, %v936, 0.0
    %v981 = vadd.f32 %v979, %v980
    %v982 = vrot.slane %v981, 4
    %v983 = vadd.f32 %v981, %v982
    %v984 = vrot.slane %v983, 2
    %v985 = vadd.f32 %v983, %v984
    %v986 = vrot.slane %v985, 1
    %v987 = vadd.f32 %v985, %v986
    %v988 = vsel %vm115, %v937, 0.0
    %v989 = vsel %vm115, %v938, 0.0
    %v990 = vadd.f32 %v988, %v989
    %v991 = vrot.slane %v990, 4
    %v992 = vadd.f32 %v990, %v991
    %v993 = vrot.slane %v992, 2
    %v994 = vadd.f32 %v992, %v993
    %v995 = vrot.slane %v994, 1
    %v996 = vadd.f32 %v994, %v995
    %v997 = vsel %vm115, %v939, 0.0
    %v998 = vsel %vm115, %v940, 0.0
    %v999 = vadd.f32 %v997, %v998
    %v1000 = vrot.slane %v999, 4
    %v1001 = vadd.f32 %v999, %v1000
    %v1002 = vrot.slane %v1001, 2
    %v1003 = vadd.f32 %v1001, %v1002
    %v1004 = vrot.slane %v1003, 1
    %v1005 = vadd.f32 %v1003, %v1004
    %v1006 = vsel %vm115, %v941, 0.0
    %v1007 = vsel %vm115, %v942, 0.0
    %v1008 = vadd.f32 %v1006, %v1007
    %v1009 = vrot.slane %v1008, 4
    %v1010 = vadd.f32 %v1008, %v1009
    %v1011 = vrot.slane %v1010, 2
    %v1012 = vadd.f32 %v1010, %v1011
    %v1013 = vrot.slane %v1012, 1
    %v1014 = vadd.f32 %v1012, %v1013
    %v1015 = vmul.f32 %v951, %v775
    %v1016 = vmul.f32 %v960, %v784
    %v1017 = vmul.f32 %v969, %v793
    %v1018 = vmul.f32 %v978, %v802
    %v1019 = vmul.f32 %v987, %v811
    %v1020 = vmul.f32 %v996, %v820
    %v1021 = vmul.f32 %v1005, %v829
    %v1022 = vmul.f32 %v1014, %v838
    %v1031 = vsel %vm95, %v1016, %v1015
    %v1032 = vsel %vm98, %v1017, %v1031
    %v1033 = vsel %vm101, %v1018, %v1032
    %v1034 = vsel %vm104, %v1019, %v1033
    %v1035 = vsel %vm107, %v1020, %v1034
    %v1036 = vsel %vm110, %v1021, %v1035
    %v1037 = vsel %vm113, %v1022, %v1036
    %v1039 = vsel %vm115, %v1037, 0.0
    %1040 = vadd.xlane.f32.xlu0 %v1039
    %v1041 = vpop.xlane.xlu0 %1040
    %v1042 = vmul.f32 %v951, %v951
    %v1043 = vmul.f32 %v960, %v960
    %v1044 = vmul.f32 %v969, %v969
    %v1045 = vmul.f32 %v978, %v978
    %v1046 = vmul.f32 %v987, %v987
    %v1047 = vmul.f32 %v996, %v996
    %v1048 = vmul.f32 %v1005, %v1005
    %v1049 = vmul.f32 %v1014, %v1014
    %v1058 = vsel %vm95, %v1043, %v1042
    %v1059 = vsel %vm98, %v1044, %v1058
    %v1060 = vsel %vm101, %v1045, %v1059
    %v1061 = vsel %vm104, %v1046, %v1060
    %v1062 = vsel %vm107, %v1047, %v1061
    %v1063 = vsel %vm110, %v1048, %v1062
    %v1064 = vsel %vm113, %v1049, %v1063
    %v1066 = vsel %vm115, %v1064, 0.0
    %1067 = vadd.xlane.f32.xlu0 %v1066
    %v1068 = vpop.xlane.xlu0 %1067
    %v1069 = vmul.f32 %v775, %v775
    %v1070 = vmul.f32 %v784, %v784
    %v1071 = vmul.f32 %v793, %v793
    %v1072 = vmul.f32 %v802, %v802
    %v1073 = vmul.f32 %v811, %v811
    %v1074 = vmul.f32 %v820, %v820
    %v1075 = vmul.f32 %v829, %v829
    %v1076 = vmul.f32 %v838, %v838
    %v1085 = vsel %vm95, %v1070, %v1069
    %v1086 = vsel %vm98, %v1071, %v1085
    %v1087 = vsel %vm101, %v1072, %v1086
    %v1088 = vsel %vm104, %v1073, %v1087
    %v1089 = vsel %vm107, %v1074, %v1088
    %v1090 = vsel %vm110, %v1075, %v1089
    %v1091 = vsel %vm113, %v1076, %v1090
    %v1093 = vsel %vm115, %v1091, 0.0
    %1094 = vadd.xlane.f32.xlu0 %v1093
    %v1095 = vpop.xlane.xlu0 %1094
    %v1096 = vmul.f32 %v1068, %v1095
    %v1097 = vadd.f32 %v1096, 1e-18
    %v1098 = vrsqrt.pop %v1097
    %v1099 = vmul.f32 %v1041, %v1098
    %v1100 = vsel %vm540, %v73, 0.0
    %1101 = vadd.xlane.f32.xlu0 %v1100
    %v1102 = vpop.xlane.xlu0 %1101
    %vm1103 = vcmp.gt.f32.partialorder %v1102, 0.0
    %v1104 = vsub.f32 %v1099, 10000.0
    %v1105 = vsel %vm1103, %v1099, %v1104
    %v1106 = vadd.f32 %v1105, 1.0
    %v1107 = vmul.f32 %v1106, 0.5
    %v1108 = vlaneseq
    %v1109 = vshrl.u32 %v1108, 7
    %vm1110 = vcmp.eq.s32.totalorder %v1109, %v456
    %v1111 = vsel %vm1110, 1, 0
    %v1112 = vcvt.s32.f32 %v1111
    %v1113 = vmul.f32 %v1107, %v1112
    %vm1114 = vcmask 64512
    %v1115 = vsel %vm1114, %v1113, 0.0
    %v1116 = vrot.slane %v1115, 4
    %v1117 = vadd.f32 %v1115, %v1116
    %v1118 = vrot.slane %v1117, 2
    %v1119 = vadd.f32 %v1117, %v1118
    %v1120 = vrot.slane %v1119, 1
    %v1121 = vadd.f32 %v1119, %v1120
    %vm1122 = vcmask 57344
    %1123 = vst.msk [vmem:[#allocation8] sm:$0x1] %vm1122, %v1121
    // Predicated region
    $region26: #{tpu_custom_call.1} parent=1 // pred_check
      _
    $region27: #{tpu_custom_call.1} parent=1 // pred_check_branch
      %1125 = sbr.rel (0) target = $region29
    $region28: #{tpu_custom_call.1} parent=1 // pred_region
      %s1127 = ssub.s32 16, 16
      %1128 = vsyncadd [#allocation4], %s1127
      %s1130 = sshll.u32 [#allocation8], 4
      %s1131 = int_to_ptr.vmem [resolvable:$true] %s1130
      %1133 = dma.vmem_to_hbm [thread:$0]  %s1131, 16, %s3, [#allocation4]
    $region29: #{tpu_custom_call.1} parent=1 // pred_fallthru
      _
    // Predicated region
    $region30: #{tpu_custom_call.1} parent=1 // pred_check
      _
    $region31: #{tpu_custom_call.1} parent=1 // pred_check_branch
      %1135 = sbr.rel (0) target = $region33
    $region32: #{tpu_custom_call.1} parent=1 // pred_region
      %1136 = dma.done [#allocation4], 16
    $region33: #{tpu_custom_call.1} parent=1 // pred_fallthru
      _
    %1137 = vsyncpa [#allocation3], 1
    %1138 = vsyncpa [#allocation6], 1
    %1139 = vsyncpa [#allocation4], 1

</llo_original>
